<compile_context>
chip_gen: v6e
topology: v6e:2x2x1
jax: 0.10.0
libtpu: 0.0.40
codegen_flags: <defaults>
</compile_context>

<pallas_src>
import math
import functools

import jax
import jax.numpy as jnp
from jax.experimental import pallas as pl
from jax.experimental.pallas import tpu as pltpu

_MIB = 1024 * 1024


def _round_up(x, m):
    return ((x + m - 1) // m) * m


# -----------------------------------------------------------------------------
# Kernels
# -----------------------------------------------------------------------------
def _mm_kernel_single_k(x_ref, w_ref, o_ref, *, scale, cast_to_bf16):
    """Single reduction step: o = (x @ w) * scale. No accumulator scratch."""
    x = x_ref[...]
    if cast_to_bf16:
        x = x.astype(jnp.bfloat16)
    out = jnp.dot(x, w_ref[...], preferred_element_type=jnp.float32)
    if scale != 1.0:
        out = out * scale
    o_ref[...] = out.astype(o_ref.dtype)


def _mm_kernel_multi_k(x_ref, w_ref, o_ref, acc_ref, *, scale, cast_to_bf16):
    """Reduction-last grid with an f32 VMEM accumulator.

    First K step writes the partial product (no zero-init pass); last K step
    applies the scale and stores in the output dtype.
    """
    k = pl.program_id(2)
    x = x_ref[...]
    if cast_to_bf16:
        x = x.astype(jnp.bfloat16)
    prod = jnp.dot(x, w_ref[...], preferred_element_type=jnp.float32)

    @pl.when(k == 0)
    def _():
        acc_ref[...] = prod

    @pl.when(k != 0)
    def _():
        acc_ref[...] = acc_ref[...] + prod

    @pl.when(k == pl.num_programs(2) - 1)
    def _():
        out = acc_ref[...]
        if scale != 1.0:
            out = out * scale
        o_ref[...] = out.astype(o_ref.dtype)


# -----------------------------------------------------------------------------
# Launcher
# -----------------------------------------------------------------------------
def _launch_matmul(x2d, w, scale, *, tm, tn, tk, out_dtype, vmem_limit_bytes):
    """(x2d @ w) * scale on already-padded operands.

    x2d: (Mp, Kp), w: (Kp, Np) with Mp % tm == 0, Np % tn == 0, Kp % tk == 0.
    """
    Mp, Kp = x2d.shape
    Kw, Np = w.shape
    assert Kw == Kp, (Kw, Kp)
    assert Mp % tm == 0 and Np % tn == 0 and Kp % tk == 0, (Mp, Np, Kp, tm, tn, tk)

    cast_to_bf16 = (w.dtype == jnp.bfloat16 and x2d.dtype == jnp.float32)

    x_isz = jnp.dtype(x2d.dtype).itemsize
    w_isz = jnp.dtype(w.dtype).itemsize
    o_isz = jnp.dtype(out_dtype).itemsize
    cost = pl.CostEstimate(
        flops=2 * Mp * Kp * Np,
        transcendentals=0,
        bytes_accessed=Mp * Kp * x_isz + Kp * Np * w_isz + Mp * Np * o_isz)

    n_k = Kp // tk
    if n_k == 1:
        kernel = functools.partial(_mm_kernel_single_k, scale=scale,
                                   cast_to_bf16=cast_to_bf16)
        grid_spec = pltpu.PrefetchScalarGridSpec(
            num_scalar_prefetch=0,
            grid=(Mp // tm, Np // tn),
            in_specs=[
                pl.BlockSpec((tm, Kp), lambda i, j: (i, 0)),   # X row tile
                pl.BlockSpec((Kp, tn), lambda i, j: (0, j)),   # weight tile
            ],
            out_specs=pl.BlockSpec((tm, tn), lambda i, j: (i, j)),
        )
        dim_sem = ("parallel", "parallel")
    else:
        kernel = functools.partial(_mm_kernel_multi_k, scale=scale,
                                   cast_to_bf16=cast_to_bf16)
        grid_spec = pltpu.PrefetchScalarGridSpec(
            num_scalar_prefetch=0,
            grid=(Mp // tm, Np // tn, n_k),                    # reduction last
            in_specs=[
                pl.BlockSpec((tm, tk), lambda i, j, k: (i, k)),
                pl.BlockSpec((tk, tn), lambda i, j, k: (k, j)),
            ],
            out_specs=pl.BlockSpec((tm, tn), lambda i, j, k: (i, j)),
            scratch_shapes=[pltpu.VMEM((tm, tn), jnp.float32)],
        )
        dim_sem = ("parallel", "parallel", "arbitrary")

    return pl.pallas_call(
        kernel,
        out_shape=jax.ShapeDtypeStruct((Mp, Np), out_dtype),
        grid_spec=grid_spec,
        compiler_params=pltpu.CompilerParams(
            dimension_semantics=dim_sem,
            vmem_limit_bytes=vmem_limit_bytes),
        cost_estimate=cost,
    )(x2d, w)


# -----------------------------------------------------------------------------
# Per-generation config + one-time weight preparation
# -----------------------------------------------------------------------------
def _hw_config():
    """VMEM budget + max tile sizes per TPU generation.

    128-MiB-VMEM parts (v5e/v6e) get a 96 MiB scoped limit and wider tiles;
    anything else (v7x's 64 MiB, or unknown) gets a conservative 44 MiB config.
    """
    phys = 0
    try:
        info = pltpu.get_tpu_info()
        phys = int(getattr(info, "vmem_capacity_bytes", 0))
    except Exception:
        phys = 0
    if phys >= 128 * _MIB:
        return dict(vmem_limit_bytes=96 * _MIB, tm_max=512, tn_max=1024, tk_max=2048)
    return dict(vmem_limit_bytes=44 * _MIB, tm_max=512, tn_max=512, tk_max=2048)


def _prep_weight(w, cfg, x_itemsize=4):
    """Pick (tk, tn, tm_max) for a (K, N) weight and zero-pad it ONCE at init."""
    K, N = w.shape
    w_isz = jnp.dtype(w.dtype).itemsize

    tn = min(cfg["tn_max"], _round_up(N, 128))
    tk = min(cfg["tk_max"], _round_up(K, 128)) if K >= 128 else K
    tm = cfg["tm_max"]

    budget = int(cfg["vmem_limit_bytes"] * 0.8)

    def working_set(tm_, tn_, tk_):
        # double-buffered inputs + output, plus the f32 accumulator scratch
        return (2 * tm_ * tk_ * x_itemsize + 2 * tk_ * tn_ * w_isz
                + 2 * tm_ * tn_ * 4 + tm_ * tn_ * 4)

    while working_set(tm, tn, tk) > budget and tk > 256:
        tk = max(128, _round_up(tk // 2, 128))
    while working_set(tm, tn, tk) > budget and tn > 256:
        tn = max(128, _round_up(tn // 2, 128))
    while working_set(tm, tn, tk) > budget and tm > 64:
        tm = max(8, _round_up(tm // 2, 8))

    Kp = _round_up(K, tk)
    Np = _round_up(N, tn)
    if (Kp, Np) != (K, N):
        w = jnp.pad(w, ((0, Kp - K), (0, Np - N)))
    return dict(w=w, K=K, N=N, Kp=Kp, Np=Np, tk=tk, tn=tn, tm_max=tm)


class EmbedPallas:
    """JAX/Pallas port of the PyTorch Embed module."""

    def __init__(self, d_vocab, d_mod, key, param_dtype=jnp.float32):
        a = math.sqrt(1.0 / d_vocab)
        # 2*a*rand(d_vocab, d_mod) - a  (uniform in [-a, a)).
        embed = jax.random.uniform(
            key, (d_vocab, d_mod), dtype=jnp.float32,
            minval=-a, maxval=a).astype(param_dtype)
        self.embed = embed
        self.d_vocab = d_vocab
        self.d_mod = d_mod
        self.cfg = _hw_config()
        # Branch "last dim == d_vocab":  X @ embed * sqrt(d_mod)
        self._b_vocab = _prep_weight(embed, self.cfg)
        # Branch "last dim == d_mod":    X @ embed.T
        # Pre-transposed + pre-padded once at init: no per-call table copy and
        # a plain (tk, tn) RHS tile in-kernel (no transposed contraction).
        self._b_mod = _prep_weight(embed.T, self.cfg)

    def _run(self, X2d, prep, scale):
        M, K = X2d.shape
        assert K == prep["K"]
        sublane = 16 if X2d.dtype == jnp.bfloat16 else 8
        tm = min(prep["tm_max"], _round_up(M, sublane))
        Mp = _round_up(M, tm)
        Kp, Np, tk, tn = prep["Kp"], prep["Np"], prep["tk"], prep["tn"]
        if (Mp, Kp) != (M, K):
            X2d = jnp.pad(X2d, ((0, Mp - M), (0, Kp - K)))
        # v7x has 2 TensorCores: keep a "parallel" axis with >= 2 steps when we can.
        if Mp // tm == 1 and Np // tn == 1 and tn % 256 == 0:
            tn //= 2
        out = _launch_matmul(
            X2d, prep["w"], scale, tm=tm, tn=tn, tk=tk,
            out_dtype=X2d.dtype,
            vmem_limit_bytes=self.cfg["vmem_limit_bytes"])
        if (Mp, Np) != (M, prep["N"]):
            out = out[:M, :prep["N"]]
        return out

    def __call__(self, X):
        lead = X.shape[:-1]
        K = X.shape[-1]
        M = 1
        for s in lead:
            M *= s
        X2d = X.reshape(M, K)

        # PyTorch's if/if ordering means the d_mod branch's result wins on a
        # tie, so check it first and launch exactly one matmul.
        if K == self.d_mod:
            out = self._run(X2d, self._b_mod, 1.0)
            return out.reshape(*lead, self.d_vocab)
        if K == self.d_vocab:
            # TODO(synk): if X is known to be one-hot token encodings, replace
            # this matmul with a scalar-prefetched row-gather kernel (reads
            # M*d_mod bytes instead of streaming the whole table).
            out = self._run(X2d, self._b_vocab, math.sqrt(self.d_mod))
            return out.reshape(*lead, self.d_mod)
        raise ValueError(
            f"last dim {K} matches neither d_vocab={self.d_vocab} "
            f"nor d_mod={self.d_mod}")


if __name__ == "__main__":
    key = jax.random.PRNGKey(0)
    k_w, k_x1, k_x2, k_x3, k_w3 = jax.random.split(key, 5)

    batch, seq = 2, 8
    d_vocab, d_mod = 32, 16

    embed = EmbedPallas(d_vocab, d_mod, k_w)

    # Branch 1: last dim == d_vocab  ->  X @ embed * sqrt(d_mod)
    X_vocab = jax.random.normal(k_x1, (batch, seq, d_vocab), dtype=jnp.float32)
    out1 = jax.block_until_ready(embed(X_vocab))
    ref1 = jnp.matmul(X_vocab, embed.embed) * math.sqrt(d_mod)
    assert out1.shape == (batch, seq, d_mod)
    assert jnp.allclose(out1, ref1, atol=1e-4, rtol=1e-4)

    # Branch 2: last dim == d_mod  ->  X @ embed.T
    X_mod = jax.random.normal(k_x2, (batch, seq, d_mod), dtype=jnp.float32)
    out2 = jax.block_until_ready(embed(X_mod))
    ref2 = jnp.matmul(X_mod, embed.embed.T)
    assert out2.shape == (batch, seq, d_vocab)
    assert jnp.allclose(out2, ref2, atol=1e-4, rtol=1e-4)

    # Also exercise the multi-K-step (accumulator) kernel path with a small
    # forced tk so both kernel variants are compile/run verified.
    Mx, Kx, Nx = 32, 256, 128
    xa = jax.random.normal(k_x3, (Mx, Kx), dtype=jnp.float32)
    wa = jax.random.normal(k_w3, (Kx, Nx), dtype=jnp.float32)
    out3 = jax.block_until_ready(_launch_matmul(
        xa, wa, 0.5, tm=32, tn=128, tk=128, out_dtype=jnp.float32,
        vmem_limit_bytes=embed.cfg["vmem_limit_bytes"]))
    ref3 = jnp.matmul(xa, wa, precision=jax.lax.Precision.HIGHEST) * 0.5
    assert out3.shape == (Mx, Nx)
    assert jnp.allclose(out3, ref3, atol=5e-2, rtol=5e-2)

    print("KERNEL_OK")
</pallas_src>

<mosaic_0001>
module attributes {stable_mosaic.version = 11 : i64} {
  func.func @_mm_kernel_single_k(%arg0: i32, %arg1: i32, %arg2: memref<16x32xf32, #tpu.memory_space<vmem>>, %arg3: memref<32x128xf32, #tpu.memory_space<vmem>>, %arg4: memref<16x128xf32, #tpu.memory_space<vmem>>) attributes {dimension_semantics = [#tpu.dimension_semantics<parallel>, #tpu.dimension_semantics<parallel>], iteration_bounds = array<i64: 1, 1>, scalar_prefetch = 0 : i64, scratch_operands = 0 : i64, tpu.core_type = #tpu.core_type<tc>, window_params = [{transform_indices = @transform_0, window_bounds = array<i64: 16, 32>}, {transform_indices = @transform_1, window_bounds = array<i64: 32, 128>}, {transform_indices = @transform_2, window_bounds = array<i64: 16, 128>}]} {
    %c0 = arith.constant 0 : index
    %c0_0 = arith.constant 0 : index
    %0 = vector.load %arg2[%c0, %c0_0] : memref<16x32xf32, #tpu.memory_space<vmem>>, vector<16x32xf32>
    %c0_1 = arith.constant 0 : index
    %c0_2 = arith.constant 0 : index
    %1 = vector.load %arg3[%c0_1, %c0_2] : memref<32x128xf32, #tpu.memory_space<vmem>>, vector<32x128xf32>
    %cst = arith.constant dense<0.000000e+00> : vector<16x128xf32>
    %2 = tpu.matmul %0, %1, %cst {dimension_numbers = #tpu.dot_dimension_numbers<[1], [0], [0], [1], [0, 0, 1, 1], [], []>} : vector<16x32xf32>, vector<32x128xf32>, vector<16x128xf32> -> vector<16x128xf32>
    %cst_3 = arith.constant 4.000000e+00 : f32
    %3 = vector.broadcast %cst_3 : f32 to vector<16x128xf32>
    %4 = arith.mulf %2, %3 : vector<16x128xf32>
    %c0_4 = arith.constant 0 : index
    %c0_5 = arith.constant 0 : index
    %5 = vector.load %arg4[%c0_4, %c0_5] : memref<16x128xf32, #tpu.memory_space<vmem>>, vector<16x128xf32>
    tpu.vector_store %arg4[%c0_4, %c0_5], %4 {strides = array<i32>} : memref<16x128xf32, #tpu.memory_space<vmem>>, vector<16x128xf32>,
    return
  }
  func.func @transform_0(%arg0: i32, %arg1: i32) -> (i32, i32) {
    %c0_i32 = arith.constant 0 : i32
    %c0_i32_0 = arith.constant 0 : i32
    return %arg0, %c0_i32 : i32, i32
  }
  func.func @transform_1(%arg0: i32, %arg1: i32) -> (i32, i32) {
    %c0_i32 = arith.constant 0 : i32
    %c0_i32_0 = arith.constant 0 : i32
    return %c0_i32, %arg1 : i32, i32
  }
  func.func @transform_2(%arg0: i32, %arg1: i32) -> (i32, i32) {
    %c0_i32 = arith.constant 0 : i32
    return %arg0, %arg1 : i32, i32
  }
}

</mosaic_0001>

<llo_original>
// kernel: tpu_custom_call.1
$region0: #{tpu_custom_call.1}
  #allocation0 [shape = 'u32[]', space=smem, size = 0x4, offset = 0x4, fixed_abs, tag = 'smem constant byte address 0x4 - core index']
  #allocation1 [shape = 'u32[144,128]{1,0:T(1,128)}', space=vmem, size = 0x12000, scoped, tag = 'internal scratch']
  %s0 = inlined_call_operand.hbm [shape: f32[16,32], index: 0, kind: input, shape index: {}]
  %s1 = inlined_call_operand.hbm [shape: f32[32,128], index: 1, kind: input, shape index: {}]
  %s2 = inlined_call_operand.hbm [shape: f32[16,128], index: 2, kind: output, shape index: {}]
  %s3 = sld [smem:[#allocation0]]
  $region26: #{tpu_custom_call.1} parent=0
    _
  %s5 = ssub.s32 1, %s3
  %s6 = scalar_select 0, %s5, %s3
  $region1: #{tpu_custom_call.1} parent=0
    #allocation2 [shape = 'u8[8192]{0}', space=vmem, size = 0x2000, scoped, tag = 'input window, operand 0, single buffered']
    #allocation3 [shape = 's32[1]{0}', space=sflag, size = 0x4, scoped, tag = 'scoped memory for tpu_custom_call.1']
    #allocation4 [shape = 's32[1]{0}', space=sflag, size = 0x4, scoped, tag = 'scoped memory for tpu_custom_call.1']
    #allocation5 [shape = 'u8[16384]{0}', space=vmem, size = 0x4000, scoped, tag = 'input window, operand 1, single buffered']
    #allocation6 [shape = 's32[1]{0}', space=sflag, size = 0x4, scoped, tag = 'scoped memory for tpu_custom_call.1']
    #allocation7 [shape = 'u8[8192]{0}', space=vmem, size = 0x2000, scoped, tag = 'output window, operand 0, single buffered']
    %7 = vsyncpa [#allocation3], 0
    %8 = vsyncpa [#allocation6], 0
    %9 = vsyncpa [#allocation4], 0
    // Predicated region
    $region2: #{tpu_custom_call.1} parent=1 // pred_check
      _
    $region3: #{tpu_custom_call.1} parent=1 // pred_check_branch
      %11 = sbr.rel (0) target = $region5
    $region4: #{tpu_custom_call.1} parent=1 // pred_region
      %s13 = ssub.s32 256, 256
      %14 = vsyncadd [#allocation3], %s13
      %s15 = sshll.u32 [#allocation2], 4
      %s16 = int_to_ptr.vmem [resolvable:$true] %s15
      %21 = dma.hbm_to_vmem [thread:$0]  %s0, 256, %s16, [#allocation3], 128, 128, 8
    $region5: #{tpu_custom_call.1} parent=1 // pred_fallthru
      _
    // Predicated region
    $region6: #{tpu_custom_call.1} parent=1 // pred_check
      _
    $region7: #{tpu_custom_call.1} parent=1 // pred_check_branch
      %23 = sbr.rel (0) target = $region9
    $region8: #{tpu_custom_call.1} parent=1 // pred_region
      %s25 = ssub.s32 512, 512
      %26 = vsyncadd [#allocation6], %s25
      %s27 = sshll.u32 [#allocation5], 4
      %s28 = int_to_ptr.vmem [resolvable:$true] %s27
      %33 = dma.hbm_to_vmem [thread:$0]  %s1, 512, %s28, [#allocation6], 128, 128, 8
    $region9: #{tpu_custom_call.1} parent=1 // pred_fallthru
      _
    // Predicated region
    $region10: #{tpu_custom_call.1} parent=1 // pred_check
      _
    $region11: #{tpu_custom_call.1} parent=1 // pred_check_branch
      %35 = sbr.rel (0) target = $region13
    $region12: #{tpu_custom_call.1} parent=1 // pred_region
      %36 = dma.done [#allocation3], 256
    $region13: #{tpu_custom_call.1} parent=1 // pred_fallthru
      _
    // Predicated region
    $region14: #{tpu_custom_call.1} parent=1 // pred_check
      _
    $region15: #{tpu_custom_call.1} parent=1 // pred_check_branch
      %38 = sbr.rel (0) target = $region17
    $region16: #{tpu_custom_call.1} parent=1 // pred_region
      %39 = dma.done [#allocation6], 512
    $region17: #{tpu_custom_call.1} parent=1 // pred_fallthru
      _
    %v40 = vld [vmem:[#allocation2] sm:$0xff]
    %v41 = vld [vmem:[#allocation2 + $0x8] sm:$0xff]
    %v42 = vld [vmem:[#allocation5] sm:$0xff]
    %v43 = vld [vmem:[#allocation5 + $0x8] sm:$0xff]
    %v44 = vld [vmem:[#allocation5 + $0x10] sm:$0xff]
    %v45 = vld [vmem:[#allocation5 + $0x18] sm:$0xff]
    %vm46 = vcmask 261120
    %v48 = vsel %vm46, %v40, 0
    %v51 = vsel %vm46, %v41, 0
    %53 = vmatprep.subr.mxu0 0.0
    %54 = vmatpush1.msra.mxu0 0.0
    %55 = vmatprep.subr.mxu0 0.0
    %56 = vmatpush1.msra.mxu0 0.0
    %57 = vmatprep.subr.mxu0 0.0
    %58 = vmatpush1.msra.mxu0 0.0
    %59 = vmatprep.subr.mxu0 0.0
    %60 = vmatpush1.msra.mxu0 0.0
    %61 = vmatprep.subr.mxu0 0.0
    %62 = vmatpush1.msra.mxu0 0.0
    %63 = vmatprep.subr.mxu0 0.0
    %64 = vmatpush1.msra.mxu0 0.0
    %65 = vmatprep.subr.mxu0 0.0
    %66 = vmatpush1.msra.mxu0 0.0
    %67 = vmatprep.subr.mxu0 0.0
    %68 = vmatpush1.msra.mxu0 0.0
    %69 = vmatprep.subr.mxu0 0.0
    %70 = vmatpush1.msra.mxu0 0.0
    %71 = vmatprep.subr.mxu0 0.0
    %72 = vmatpush1.msra.mxu0 0.0
    %73 = vmatprep.subr.mxu0 0.0
    %74 = vmatpush1.msra.mxu0 0.0
    %75 = vmatprep.subr.mxu0 0.0
    %76 = vmatpush1.msra.mxu0 0.0
    %77 = vmatprep.subr.mxu0 0.0
    %78 = vmatpush1.msra.mxu0 %v45
    %79 = vmatprep.subr.mxu0 0.0
    %80 = vmatpush1.msra.mxu0 %v44
    %81 = vmatprep.subr.mxu0 0.0
    %82 = vmatpush1.msra.mxu0 %v43
    %83 = vmatprep.subr.mxu0 0.0
    %84 = vmatpush1.msra.mxu0 %v42
    %85 = vmatprep.subr.mxu0 0.0
    %86 = vmatpush2.msra.mxu0 0.0
    %87 = vmatprep.subr.mxu0 0.0
    %88 = vmatpush2.msra.mxu0 0.0
    %89 = vmatprep.subr.mxu0 0.0
    %90 = vmatpush2.msra.mxu0 0.0
    %91 = vmatprep.subr.mxu0 0.0
    %92 = vmatpush2.msra.mxu0 0.0
    %93 = vmatprep.subr.mxu0 0.0
    %94 = vmatpush2.msra.mxu0 0.0
    %95 = vmatprep.subr.mxu0 0.0
    %96 = vmatpush2.msra.mxu0 0.0
    %97 = vmatprep.subr.mxu0 0.0
    %98 = vmatpush2.msra.mxu0 0.0
    %99 = vmatprep.subr.mxu0 0.0
    %100 = vmatpush2.msra.mxu0 0.0
    %101 = vmatprep.subr.mxu0 0.0
    %102 = vmatpush2.msra.mxu0 0.0
    %103 = vmatprep.subr.mxu0 0.0
    %104 = vmatpush2.msra.mxu0 0.0
    %105 = vmatprep.subr.mxu0 0.0
    %106 = vmatpush2.msra.mxu0 0.0
    %107 = vmatprep.subr.mxu0 0.0
    %108 = vmatpush2.msra.mxu0 0.0
    %109 = vmatprep.subr.mxu0 0.0
    %110 = vmatpush2.msra.mxu0 0.0
    %111 = vmatprep.subr.mxu0 0.0
    %112 = vmatpush2.msra.mxu0 0.0
    %113 = vmatprep.subr.mxu0 0.0
    %114 = vmatpush2.msra.mxu0 0.0
    %115 = vmatprep.subr.mxu0 0.0
    %116 = vmatpush2.msra.mxu0 0.0
    %117 = vmatprep.mubr.f32.mxu0 0.0
    %118 = vmatmul.mubr.f32.gmra.mxu0 %v48
    %v119 = vpop.f32.mrf.mxu0
    %v120 = vadd.f32 0.0, %v119
    %v121 = vpop.f32.mrf.mxu0
    %122 = vmatprep.mubr.f32.mxu0 0.0
    %123 = vmatmul.mubr.f32.gmra.mxu0 %v51
    %v124 = vpop.f32.mrf.mxu0
    %v125 = vadd.f32 0.0, %v124
    %v126 = vpop.f32.mrf.mxu0
    %127 = vdwg.mxu0
    %v128 = vmul.f32 %v120, 4.0
    %v129 = vmul.f32 %v125, 4.0
    %130 = vst [vmem:[#allocation7] sm:$0xff] %v128
    %131 = vst [vmem:[#allocation7 + $0x8] sm:$0xff] %v129
    // Predicated region
    $region18: #{tpu_custom_call.1} parent=1 // pred_check
      _
    $region19: #{tpu_custom_call.1} parent=1 // pred_check_branch
      %133 = sbr.rel (0) target = $region21
    $region20: #{tpu_custom_call.1} parent=1 // pred_region
      %s135 = ssub.s32 256, 256
      %136 = vsyncadd [#allocation4], %s135
      %s137 = sshll.u32 [#allocation7], 4
      %s138 = int_to_ptr.vmem [resolvable:$true] %s137
      %143 = dma.vmem_to_hbm [thread:$0]  %s138, 256, %s2, [#allocation4], 128, 128, 8
    $region21: #{tpu_custom_call.1} parent=1 // pred_fallthru
      _
    // Predicated region
    $region22: #{tpu_custom_call.1} parent=1 // pred_check
      _
    $region23: #{tpu_custom_call.1} parent=1 // pred_check_branch
      %145 = sbr.rel (0) target = $region25
    $region24: #{tpu_custom_call.1} parent=1 // pred_region
      %146 = dma.done [#allocation4], 256
    $region25: #{tpu_custom_call.1} parent=1 // pred_fallthru
      _
    %147 = vsyncpa [#allocation3], 1
    %148 = vsyncpa [#allocation6], 1
    %149 = vsyncpa [#allocation4], 1

</llo_original>
